<compile_context>
chip_gen: v7x
topology: tpu7x:2x2x1
jax: 0.10.0
libtpu: 0.0.40
codegen_flags: <defaults>
</compile_context>

<pallas_src>
import jax
import jax.numpy as jnp
from jax.experimental import pallas as pl
from jax.experimental.pallas import tpu as pltpu


# ----------------------------------------------------------------------------
# Kernel
# ----------------------------------------------------------------------------
def _make_kernel(n_sparse, max_vocab, embedding_size, n_dense):
    W = n_sparse * embedding_size

    def kernel(idx_ref, tbl_ref, *rest):
        dense_refs = rest[:n_dense]
        out_ref = rest[n_dense]

        idx = idx_ref[...]                      # (tile_b, n_sparse) int32
        slab = tbl_ref[...]                     # (max_vocab, W) float32
        tile_b = idx.shape[0]

        # Expand each field's index across its E embedding lanes — once per
        # tile (not per vocab value).
        cmp = jnp.concatenate(
            [jnp.broadcast_to(idx[:, i:i + 1], (tile_b, embedding_size))
             for i in range(n_sparse)],
            axis=-1)                            # (tile_b, W) int32

        # Single fused where-chain of length max_vocab over ALL sparse fields.
        emb = jnp.zeros((tile_b, W), jnp.float32)
        for v in range(max_vocab):
            emb = jnp.where(cmp == v, slab[v:v + 1, :], emb)

        pieces = [emb]
        # Dense fields: passthrough, cast on the VPU (inputs arrive in native
        # dtype; no wrapper-side f32 copy in HBM).
        for j in range(n_dense):
            pieces.append(dense_refs[j][...].astype(jnp.float32))

        # One lane-dense store of the whole output block.
        out_ref[...] = jnp.concatenate(pieces, axis=-1).astype(out_ref.dtype)

    return kernel


# ----------------------------------------------------------------------------
# Tiling helpers
# ----------------------------------------------------------------------------
_TILE_LADDER = (4096, 2048, 1024, 512, 256, 128, 64, 32, 16, 8)


def _lane_pad(n):
    return ((n + 127) // 128) * 128


def _pick_batch_tile(batch, per_row_bytes, vmem_budget=24 * 1024 * 1024):
    """Largest tile that divides the batch, keeps >= 2 grid steps (v7x
    megacore) and whose double-buffered blocks fit the scoped-VMEM budget."""
    for t in _TILE_LADDER:
        if batch % t != 0:
            continue
        if batch // t < 2:
            continue
        if 2 * t * per_row_bytes > vmem_budget:
            continue
        return t
    return batch   # tiny / odd batch: a single block covering the whole batch


# ----------------------------------------------------------------------------
# Layer
# ----------------------------------------------------------------------------
class EmbeddingConcatLayer:
    """JAX/Pallas port of the PyTorch EmbeddingConcatLayer.

    feature_dim_dict: {'sparse': {name: vocab, ...}, 'dense': {name: dim, ...}}
    """

    def __init__(self, feature_dim_dict, embedding_size, *, key=None,
                 embedding_tables=None, out_dtype=jnp.float32,
                 min_pallas_batch=256, deep_buffer=False):
        self.feature_dim_dict = feature_dim_dict
        self.embedding_size = int(embedding_size)
        self.sparse_names = list(feature_dim_dict["sparse"].keys())
        self.sparse_vocabs = [int(feature_dim_dict["sparse"][n])
                              for n in self.sparse_names]
        self.dense_names = list(feature_dim_dict["dense"].keys())
        self.dense_dims = [int(feature_dim_dict["dense"][n])
                           for n in self.dense_names]
        self.n_sparse = len(self.sparse_names)
        self.n_dense = len(self.dense_names)
        self.max_vocab = max(self.sparse_vocabs)
        self.output_size = (self.embedding_size * self.n_sparse
                            + sum(self.dense_dims))
        self.out_dtype = out_dtype
        self.min_pallas_batch = int(min_pallas_batch)
        self.deep_buffer = bool(deep_buffer)

        # ---- parameters (like nn.Embedding: N(0,1) init) -------------------
        if embedding_tables is None:
            assert key is not None, "need a PRNG key to init embedding tables"
            embedding_tables = {}
            for name, vocab in zip(self.sparse_names, self.sparse_vocabs):
                key, sub = jax.random.split(key)
                embedding_tables[name] = jax.random.normal(
                    sub, (vocab, self.embedding_size), dtype=jnp.float32)
        self.embedding_tables = {n: embedding_tables[n].astype(jnp.float32)
                                 for n in self.sparse_names}

        # ---- pack tables ONCE at init into (max_vocab, n_sparse*E) ---------
        E = self.embedding_size
        slab = jnp.zeros((self.max_vocab, self.n_sparse * E), jnp.float32)
        for i, name in enumerate(self.sparse_names):
            slab = slab.at[:self.sparse_vocabs[i], i * E:(i + 1) * E].set(
                self.embedding_tables[name])
        self.table_slab = slab

        self._kernel = _make_kernel(self.n_sparse, self.max_vocab,
                                    self.embedding_size, self.n_dense)

    # ------------------------------------------------------------------ JAX
    def _reference_forward(self, sparse_in, dense_in):
        feats = []
        for name in self.sparse_names:
            feats.append(jnp.take(self.embedding_tables[name],
                                  sparse_in[name].astype(jnp.int32), axis=0))
        for name in self.dense_names:
            feats.append(dense_in[name].astype(jnp.float32))
        return jnp.concatenate(feats, axis=-1).astype(self.out_dtype)

    # --------------------------------------------------------------- Pallas
    def __call__(self, input_dict, *, batch_tile=None):
        sparse_in = input_dict["sparse"]
        dense_in = input_dict["dense"]

        batch = sparse_in[self.sparse_names[0]].shape[0]

        # Small-batch fast path: launch + pipeline overhead would dominate.
        if batch < self.min_pallas_batch:
            return self._reference_forward(sparse_in, dense_in)

        # Pack all sparse index columns into one (batch, n_sparse) operand.
        idx = jnp.stack([sparse_in[n].astype(jnp.int32)
                         for n in self.sparse_names], axis=-1)
        # Dense fields in their NATIVE dtype (cast happens in-kernel).
        dns = [dense_in[n] for n in self.dense_names]

        out_dim = self.output_size
        out_itemsize = jnp.dtype(self.out_dtype).itemsize

        # Per-row lane-padded VMEM footprint of all pipelined streams.
        per_row = _lane_pad(self.n_sparse) * 4
        per_row += _lane_pad(out_dim) * out_itemsize
        for d, arr in zip(self.dense_dims, dns):
            per_row += _lane_pad(d) * jnp.dtype(arr.dtype).itemsize

        tile_b = batch_tile if batch_tile is not None else _pick_batch_tile(
            batch, per_row)
        assert batch % tile_b == 0, (batch, tile_b)
        assert tile_b == batch or tile_b % 8 == 0, tile_b
        grid = (batch // tile_b,)

        in_specs = [
            # packed indices, tiled along batch
            pl.BlockSpec((tile_b, self.n_sparse), lambda i: (i, 0)),
            # packed table slab, whole (tiny) array every step
            pl.BlockSpec((self.max_vocab, self.n_sparse * self.embedding_size),
                         lambda i: (0, 0)),
        ]
        for d in self.dense_dims:
            if self.deep_buffer and d >= 64:
                # v7x-only: deepen pipelining on the wide stream when tiles
                # are kept small.
                in_specs.append(pl.BlockSpec((tile_b, d), lambda i: (i, 0),
                                             pipeline_mode=pl.Buffered(3)))
            else:
                in_specs.append(pl.BlockSpec((tile_b, d), lambda i: (i, 0)))

        if self.deep_buffer:
            out_spec = pl.BlockSpec((tile_b, out_dim), lambda i: (i, 0),
                                    pipeline_mode=pl.Buffered(3))
        else:
            out_spec = pl.BlockSpec((tile_b, out_dim), lambda i: (i, 0))

        return pl.pallas_call(
            self._kernel,
            out_shape=jax.ShapeDtypeStruct((batch, out_dim), self.out_dtype),
            grid=grid,
            in_specs=in_specs,
            out_specs=out_spec,
            compiler_params=pltpu.CompilerParams(
                dimension_semantics=("parallel",)),  # batch axis -> v7x megacore
        )(idx, self.table_slab, *dns)


# ----------------------------------------------------------------------------
# Test
# ----------------------------------------------------------------------------
if __name__ == "__main__":
    # Mirrors the module docstring example:
    # {'sparse': {'field_1': 4, 'field_2': 3, 'field_3': 2},
    #  'dense' : {'field_4': 128, 'field_5': 1}}
    feature_dim_dict = {
        "sparse": {"field_1": 4, "field_2": 3, "field_3": 2},
        "dense": {"field_4": 128, "field_5": 1},
    }
    embedding_size = 8
    batch = 512   # >= min_pallas_batch, so the Pallas path runs (tile=256, grid=2)

    key = jax.random.PRNGKey(0)
    key, tkey = jax.random.split(key)
    layer = EmbeddingConcatLayer(feature_dim_dict, embedding_size, key=tkey)

    sparse_in = {}
    for name, vocab in feature_dim_dict["sparse"].items():
        key, sub = jax.random.split(key)
        sparse_in[name] = jax.random.randint(sub, (batch,), 0, vocab,
                                             dtype=jnp.int32)

    dense_in = {}
    key, sub = jax.random.split(key)
    # Native bf16 dense input (no wrapper-side f32 copy; cast happens in-kernel).
    dense_in["field_4"] = jax.random.normal(
        sub, (batch, 128), dtype=jnp.float32).astype(jnp.bfloat16)
    key, sub = jax.random.split(key)
    dense_in["field_5"] = jax.random.normal(sub, (batch, 1), dtype=jnp.float32)

    input_dict = {"sparse": sparse_in, "dense": dense_in}

    out = jax.block_until_ready(layer(input_dict))
    ref = layer._reference_forward(sparse_in, dense_in)

    assert out.shape == (batch, layer.output_size), out.shape
    assert out.dtype == jnp.float32, out.dtype
    assert jnp.allclose(out, ref, atol=1e-6, rtol=1e-6), "mismatch vs reference"

    # Small-batch fast path (pure JAX, skips pallas_call entirely).
    small = {"sparse": {k: v[:16] for k, v in sparse_in.items()},
             "dense": {k: v[:16] for k, v in dense_in.items()}}
    out_small = jax.block_until_ready(layer(small))
    assert jnp.allclose(out_small, ref[:16], atol=1e-6, rtol=1e-6)

    print("KERNEL_OK")
</pallas_src>

<mosaic_0001>
module attributes {stable_mosaic.version = 11 : i64} {
  func.func @kernel(%arg0: i32, %arg1: memref<256x3xi32, #tpu.memory_space<vmem>>, %arg2: memref<4x24xf32, #tpu.memory_space<vmem>>, %arg3: memref<256x128xbf16, #tpu.memory_space<vmem>>, %arg4: memref<256x1xf32, #tpu.memory_space<vmem>>, %arg5: memref<256x153xf32, #tpu.memory_space<vmem>>) attributes {dimension_semantics = [#tpu.dimension_semantics<parallel>], iteration_bounds = array<i64: 2>, scalar_prefetch = 0 : i64, scratch_operands = 0 : i64, tpu.core_type = #tpu.core_type<tc>, window_params = [{transform_indices = @transform_0, window_bounds = array<i64: 256, 3>}, {pipeline_mode = #tpu.pipeline_mode<synchronous>, transform_indices = @transform_1, window_bounds = array<i64: 4, 24>}, {transform_indices = @transform_2, window_bounds = array<i64: 256, 128>}, {transform_indices = @transform_3, window_bounds = array<i64: 256, 1>}, {transform_indices = @transform_4, window_bounds = array<i64: 256, 153>}]} {
    %c0 = arith.constant 0 : index
    %c0_0 = arith.constant 0 : index
    %0 = vector.load %arg1[%c0, %c0_0] : memref<256x3xi32, #tpu.memory_space<vmem>>, vector<256x3xi32>
    %c0_1 = arith.constant 0 : index
    %c0_2 = arith.constant 0 : index
    %1 = vector.load %arg2[%c0_1, %c0_2] : memref<4x24xf32, #tpu.memory_space<vmem>>, vector<4x24xf32>
    %2 = vector.extract_strided_slice %0 {offsets = [0, 0], sizes = [256, 1], strides = [1, 1]} : vector<256x3xi32> to vector<256x1xi32>
    %3 = vector.shape_cast %2 : vector<256x1xi32> to vector<256x1xi32>
    %4 = vector.broadcast %3 : vector<256x1xi32> to vector<256x8xi32>
    %5 = vector.extract_strided_slice %0 {offsets = [0, 1], sizes = [256, 1], strides = [1, 1]} : vector<256x3xi32> to vector<256x1xi32>
    %6 = vector.shape_cast %5 : vector<256x1xi32> to vector<256x1xi32>
    %7 = vector.broadcast %6 : vector<256x1xi32> to vector<256x8xi32>
    %8 = vector.extract_strided_slice %0 {offsets = [0, 2], sizes = [256, 1], strides = [1, 1]} : vector<256x3xi32> to vector<256x1xi32>
    %9 = vector.shape_cast %8 : vector<256x1xi32> to vector<256x1xi32>
    %10 = vector.broadcast %9 : vector<256x1xi32> to vector<256x8xi32>
    %11 = tpu.concatenate %4, %7, %10 in 1 : vector<256x8xi32>, vector<256x8xi32>, vector<256x8xi32> -> vector<256x24xi32>
    %cst = arith.constant 0.000000e+00 : f32
    %12 = vector.broadcast %cst : f32 to vector<256x24xf32>
    %c0_i32 = arith.constant 0 : i32
    %13 = vector.broadcast %c0_i32 : i32 to vector<256x24xi32>
    %14 = arith.cmpi eq, %11, %13 : vector<256x24xi32>
    %15 = vector.extract_strided_slice %1 {offsets = [0, 0], sizes = [1, 24], strides = [1, 1]} : vector<4x24xf32> to vector<1x24xf32>
    %16 = vector.shape_cast %15 : vector<1x24xf32> to vector<1x24xf32>
    %17 = vector.broadcast %16 : vector<1x24xf32> to vector<256x24xf32>
    %18 = arith.select %14, %17, %12 : vector<256x24xi1>, vector<256x24xf32>
    %c1_i32 = arith.constant 1 : i32
    %19 = vector.broadcast %c1_i32 : i32 to vector<256x24xi32>
    %20 = arith.cmpi eq, %11, %19 : vector<256x24xi32>
    %21 = vector.extract_strided_slice %1 {offsets = [1, 0], sizes = [1, 24], strides = [1, 1]} : vector<4x24xf32> to vector<1x24xf32>
    %22 = vector.shape_cast %21 : vector<1x24xf32> to vector<1x24xf32>
    %23 = vector.broadcast %22 : vector<1x24xf32> to vector<256x24xf32>
    %24 = arith.select %20, %23, %18 : vector<256x24xi1>, vector<256x24xf32>
    %c2_i32 = arith.constant 2 : i32
    %25 = vector.broadcast %c2_i32 : i32 to vector<256x24xi32>
    %26 = arith.cmpi eq, %11, %25 : vector<256x24xi32>
    %27 = vector.extract_strided_slice %1 {offsets = [2, 0], sizes = [1, 24], strides = [1, 1]} : vector<4x24xf32> to vector<1x24xf32>
    %28 = vector.shape_cast %27 : vector<1x24xf32> to vector<1x24xf32>
    %29 = vector.broadcast %28 : vector<1x24xf32> to vector<256x24xf32>
    %30 = arith.select %26, %29, %24 : vector<256x24xi1>, vector<256x24xf32>
    %c3_i32 = arith.constant 3 : i32
    %31 = vector.broadcast %c3_i32 : i32 to vector<256x24xi32>
    %32 = arith.cmpi eq, %11, %31 : vector<256x24xi32>
    %33 = vector.extract_strided_slice %1 {offsets = [3, 0], sizes = [1, 24], strides = [1, 1]} : vector<4x24xf32> to vector<1x24xf32>
    %34 = vector.shape_cast %33 : vector<1x24xf32> to vector<1x24xf32>
    %35 = vector.broadcast %34 : vector<1x24xf32> to vector<256x24xf32>
    %36 = arith.select %32, %35, %30 : vector<256x24xi1>, vector<256x24xf32>
    %c0_3 = arith.constant 0 : index
    %c0_4 = arith.constant 0 : index
    %37 = vector.load %arg3[%c0_3, %c0_4] : memref<256x128xbf16, #tpu.memory_space<vmem>>, vector<256x128xbf16>
    %38 = arith.extf %37 : vector<256x128xbf16> to vector<256x128xf32>
    %c0_5 = arith.constant 0 : index
    %c0_6 = arith.constant 0 : index
    %39 = vector.load %arg4[%c0_5, %c0_6] : memref<256x1xf32, #tpu.memory_space<vmem>>, vector<256x1xf32>
    %40 = tpu.concatenate %36, %38, %39 in 1 : vector<256x24xf32>, vector<256x128xf32>, vector<256x1xf32> -> vector<256x153xf32>
    %c0_7 = arith.constant 0 : index
    %c0_8 = arith.constant 0 : index
    %41 = vector.load %arg5[%c0_7, %c0_8] : memref<256x153xf32, #tpu.memory_space<vmem>>, vector<256x153xf32>
    tpu.vector_store %arg5[%c0_7, %c0_8], %40 {strides = array<i32>} : memref<256x153xf32, #tpu.memory_space<vmem>>, vector<256x153xf32>,
    return
  }
  func.func @transform_0(%arg0: i32) -> (i32, i32) {
    %c0_i32 = arith.constant 0 : i32
    %c0_i32_0 = arith.constant 0 : i32
    return %arg0, %c0_i32 : i32, i32
  }
  func.func @transform_1(%arg0: i32) -> (i32, i32) {
    %c0_i32 = arith.constant 0 : i32
    %c0_i32_0 = arith.constant 0 : i32
    %c0_i32_1 = arith.constant 0 : i32
    return %c0_i32, %c0_i32_0 : i32, i32
  }
  func.func @transform_2(%arg0: i32) -> (i32, i32) {
    %c0_i32 = arith.constant 0 : i32
    %c0_i32_0 = arith.constant 0 : i32
    return %arg0, %c0_i32 : i32, i32
  }
  func.func @transform_3(%arg0: i32) -> (i32, i32) {
    %c0_i32 = arith.constant 0 : i32
    %c0_i32_0 = arith.constant 0 : i32
    return %arg0, %c0_i32 : i32, i32
  }
  func.func @transform_4(%arg0: i32) -> (i32, i32) {
    %c0_i32 = arith.constant 0 : i32
    %c0_i32_0 = arith.constant 0 : i32
    return %arg0, %c0_i32 : i32, i32
  }
}

</mosaic_0001>

<llo_original>
// kernel: tpu_custom_call.1
$region0: #{tpu_custom_call.1}
  #allocation0 [shape = 'u32[]', space=smem, size = 0x4, offset = 0x4, fixed_abs, tag = 'smem constant byte address 0x4 - core index']
  #allocation1 [shape = 'u32[144,128]{1,0:T(1,128)}', space=vmem, size = 0x12000, scoped, tag = 'internal scratch']
  %s0 = inlined_call_operand.vmem [shape: s32[512,3], index: 0, kind: input, shape index: {}]
  %s1 = inlined_call_operand.vmem [shape: f32[4,24], index: 1, kind: input, shape index: {}]
  %s2 = inlined_call_operand.vmem [shape: bf16[512,128], index: 2, kind: input, shape index: {}]
  %s3 = inlined_call_operand.vmem [shape: f32[512,1], index: 3, kind: input, shape index: {}]
  %s4 = inlined_call_operand.vmem [shape: f32[512,153], index: 4, kind: output, shape index: {}]
  %s5 = sld [smem:[#allocation0]]
  $region49: #{tpu_custom_call.1} parent=0
    _
  %s7 = ssub.s32 1, %s5
  %s8 = scalar_select 0, %s7, %s5
  loop: start=0, step=1, limit=4
  $region2: #{tpu_custom_call.1} parent=0 // loop_pre_header
    _
  $region3: #{tpu_custom_call.1} parent=0 // loop_header
    %s10 = sphi 0, %s14
    %p11 = scmp.ge.s32.totalorder %s10, 4
    %s20 = sphi 0, %s22
    %s23 = sphi 0, %s20
    %s24 = sphi 0, %s23
    %s40 = sphi 0, %s24
    %s44 = sphi 0, %s44
    %s46 = sphi 0, %s44
    %s47 = sphi 0, %s46
    %s61 = sphi 0, %s47
    %s67 = sphi 0, %s69
    %s70 = sphi 0, %s67
    %s71 = sphi 0, %s70
    %s87 = sphi 0, %s71
    %s93 = sphi 0, %s95
    %s96 = sphi 0, %s93
    %s97 = sphi 0, %s96
    %s113 = sphi 0, %s97
    %s119 = sphi 0, %s121
    %s122 = sphi 0, %s119
    %s123 = sphi 0, %s122
    %s139 = sphi 0, %s123
  $region4: #{tpu_custom_call.1} parent=0 // loop_header_branch
    %13 = sbr.rel (%p11) target = $region8
  $region5: #{tpu_custom_call.1} parent=0 // loop_body
    %s15 = ssub.s32 %s10, 1
    %s16 = ssub.s32 %s10, 2
    %s17 = sadd.s32 %s10, 1
    %s18 = ssub.s32 %s10, %s17
    %p19 = scmp.eq.s32.totalorder %s18, 0
    %s21 = sadd.s32 %s20, 1
    %s22 = scalar_select %p19, %s20, %s21
    %p25 = pneg %p19
    %p26 = scmp.eq.s32.totalorder %s10, 1
    %p27 = por %p25, %p26
    %p28 = scmp.ne.s32.totalorder %s20, %s23
    %p29 = scmp.eq.s32.totalorder %s10, 0
    %p30 = por %p28, %p29
    %p31 = scmp.ne.s32.totalorder %s20, %s23
    %p32 = scmp.eq.s32.totalorder %s15, 1
    %p33 = por %p31, %p32
    %p34 = scmp.ne.s32.totalorder %s23, %s24
    %p35 = scmp.eq.s32.totalorder %s15, 0
    %p36 = por %p34, %p35
    %p37 = scmp.ne.s32.totalorder %s23, %s24
    %p38 = scmp.eq.s32.totalorder %s16, 1
    %p39 = por %p37, %p38
    %p41 = scmp.ne.s32.totalorder %s24, %s40
    %p42 = scmp.eq.s32.totalorder %s16, 0
    %p43 = por %p41, %p42
    %s45 = sadd.s32 %s44, 1
    %p48 = scmp.eq.s32.totalorder %s10, 1
    %p49 = scmp.ne.s32.totalorder %s44, %s46
    %p50 = scmp.eq.s32.totalorder %s10, 0
    %p51 = por %p49, %p50
    %p52 = scmp.ne.s32.totalorder %s44, %s46
    %p53 = scmp.eq.s32.totalorder %s15, 1
    %p54 = por %p52, %p53
    %p55 = scmp.ne.s32.totalorder %s46, %s47
    %p56 = scmp.eq.s32.totalorder %s15, 0
    %p57 = por %p55, %p56
    %p58 = scmp.ne.s32.totalorder %s46, %s47
    %p59 = scmp.eq.s32.totalorder %s16, 1
    %p60 = por %p58, %p59
    %p62 = scmp.ne.s32.totalorder %s47, %s61
    %p63 = scmp.eq.s32.totalorder %s16, 0
    %p64 = por %p62, %p63
    %s65 = ssub.s32 %s10, %s17
    %p66 = scmp.eq.s32.totalorder %s65, 0
    %s68 = sadd.s32 %s67, 1
    %s69 = scalar_select %p66, %s67, %s68
    %p72 = pneg %p66
    %p73 = scmp.eq.s32.totalorder %s10, 1
    %p74 = por %p72, %p73
    %p75 = scmp.ne.s32.totalorder %s67, %s70
    %p76 = scmp.eq.s32.totalorder %s10, 0
    %p77 = por %p75, %p76
    %p78 = scmp.ne.s32.totalorder %s67, %s70
    %p79 = scmp.eq.s32.totalorder %s15, 1
    %p80 = por %p78, %p79
    %p81 = scmp.ne.s32.totalorder %s70, %s71
    %p82 = scmp.eq.s32.totalorder %s15, 0
    %p83 = por %p81, %p82
    %p84 = scmp.ne.s32.totalorder %s70, %s71
    %p85 = scmp.eq.s32.totalorder %s16, 1
    %p86 = por %p84, %p85
    %p88 = scmp.ne.s32.totalorder %s71, %s87
    %p89 = scmp.eq.s32.totalorder %s16, 0
    %p90 = por %p88, %p89
    %s91 = ssub.s32 %s10, %s17
    %p92 = scmp.eq.s32.totalorder %s91, 0
    %s94 = sadd.s32 %s93, 1
    %s95 = scalar_select %p92, %s93, %s94
    %p98 = pneg %p92
    %p99 = scmp.eq.s32.totalorder %s10, 1
    %p100 = por %p98, %p99
    %p101 = scmp.ne.s32.totalorder %s93, %s96
    %p102 = scmp.eq.s32.totalorder %s10, 0
    %p103 = por %p101, %p102
    %p104 = scmp.ne.s32.totalorder %s93, %s96
    %p105 = scmp.eq.s32.totalorder %s15, 1
    %p106 = por %p104, %p105
    %p107 = scmp.ne.s32.totalorder %s96, %s97
    %p108 = scmp.eq.s32.totalorder %s15, 0
    %p109 = por %p107, %p108
    %p110 = scmp.ne.s32.totalorder %s96, %s97
    %p111 = scmp.eq.s32.totalorder %s16, 1
    %p112 = por %p110, %p111
    %p114 = scmp.ne.s32.totalorder %s97, %s113
    %p115 = scmp.eq.s32.totalorder %s16, 0
    %p116 = por %p114, %p115
    %s117 = ssub.s32 %s10, %s17
    %p118 = scmp.eq.s32.totalorder %s117, 0
    %s120 = sadd.s32 %s119, 1
    %s121 = scalar_select %p118, %s119, %s120
    %p124 = pneg %p118
    %p125 = scmp.eq.s32.totalorder %s10, 1
    %p126 = por %p124, %p125
    %p127 = scmp.ne.s32.totalorder %s119, %s122
    %p128 = scmp.eq.s32.totalorder %s10, 0
    %p129 = por %p127, %p128
    %p130 = scmp.ne.s32.totalorder %s119, %s122
    %p131 = scmp.eq.s32.totalorder %s15, 1
    %p132 = por %p130, %p131
    %p133 = scmp.ne.s32.totalorder %s122, %s123
    %p134 = scmp.eq.s32.totalorder %s15, 0
    %p135 = por %p133, %p134
    %p136 = scmp.ne.s32.totalorder %s122, %s123
    %p137 = scmp.eq.s32.totalorder %s16, 1
    %p138 = por %p136, %p137
    %p140 = scmp.ne.s32.totalorder %s123, %s139
    %p141 = scmp.eq.s32.totalorder %s16, 0
    %p142 = por %p140, %p141
    %p143 = scmp.le.s32.totalorder 1, %s10
    %p144 = scmp.lt.s32.totalorder %s10, 3
    %p145 = pnand %p143, %p144
    %p146 = pneg %p145
    // Predicated region
    $region9: #{tpu_custom_call.1} parent=5 // pred_check
      _
    $region10: #{tpu_custom_call.1} parent=5 // pred_check_branch
      %148 = sbr.rel (%p145) target = $region12
    $region11: #{tpu_custom_call.1} parent=5 // pred_region
      %s149 = ssub.s32 %s10, 1
      // Predicated region
      $region13: #{tpu_custom_call.1} parent=11 // pred_check
        %p150 = pneg %p57
      $region14: #{tpu_custom_call.1} parent=11 // pred_check_branch
        %152 = sbr.rel (%p150) target = $region16
      $region15: #{tpu_custom_call.1} parent=11 // pred_region
        _
      $region16: #{tpu_custom_call.1} parent=11 // pred_fallthru
        _
    $region12: #{tpu_custom_call.1} parent=5 // pred_fallthru
      _
    %p153 = scmp.lt.s32.totalorder %s10, 2
    // Predicated region
    $region17: #{tpu_custom_call.1} parent=5 // pred_check
      %p154 = pneg %p153
    $region18: #{tpu_custom_call.1} parent=5 // pred_check_branch
      %156 = sbr.rel (%p154) target = $region20
    $region19: #{tpu_custom_call.1} parent=5 // pred_region
      // Predicated region
      $region21: #{tpu_custom_call.1} parent=19 // pred_check
        %p157 = pneg %p30
      $region22: #{tpu_custom_call.1} parent=19 // pred_check_branch
        %159 = sbr.rel (%p157) target = $region24
      $region23: #{tpu_custom_call.1} parent=19 // pred_region
        %s160 = smul.u32 32, %s10
        %p161 = scmp.lt.s32.totalorder %s160, 63
        %s162 = scalar_select %p161, %s160, 63
        %s163 = smul.addr %s162, 8
        %s164 = scalar_lea.vmem %s0, %s163
        %s165 = smul.u32 32, %s10
      $region24: #{tpu_custom_call.1} parent=19 // pred_fallthru
        _
      // Predicated region
      $region25: #{tpu_custom_call.1} parent=19 // pred_check
        %p166 = pneg %p77
      $region26: #{tpu_custom_call.1} parent=19 // pred_check_branch
        %168 = sbr.rel (%p166) target = $region28
      $region27: #{tpu_custom_call.1} parent=19 // pred_region
        %s169 = smul.u32 32, %s10
        %p170 = scmp.lt.s32.totalorder %s169, 63
        %s171 = scalar_select %p170, %s169, 63
        %s172 = smul.addr %s171, 4
        %s173 = scalar_lea.vmem %s2, %s172
        %s174 = smul.u32 32, %s10
      $region28: #{tpu_custom_call.1} parent=19 // pred_fallthru
        _
      // Predicated region
      $region29: #{tpu_custom_call.1} parent=19 // pred_check
        %p175 = pneg %p103
      $region30: #{tpu_custom_call.1} parent=19 // pred_check_branch
        %177 = sbr.rel (%p175) target = $region32
      $region31: #{tpu_custom_call.1} parent=19 // pred_region
        %s178 = smul.u32 32, %s10
        %p179 = scmp.lt.s32.totalorder %s178, 63
        %s180 = scalar_select %p179, %s178, 63
        %s181 = smul.addr %s180, 8
        %s182 = scalar_lea.vmem %s3, %s181
        %s183 = smul.u32 32, %s10
      $region32: #{tpu_custom_call.1} parent=19 // pred_fallthru
        _
    $region20: #{tpu_custom_call.1} parent=5 // pred_fallthru
      _
    %p184 = scmp.le.s32.totalorder 1, %s10
    %p185 = scmp.lt.s32.totalorder %s10, 3
    %p186 = pnand %p184, %p185
    %p187 = pneg %p186
    // Predicated region
    $region33: #{tpu_custom_call.1} parent=5 // pred_check
      _
    $region34: #{tpu_custom_call.1} parent=5 // pred_check_branch
      %189 = sbr.rel (%p186) target = $region36
    $region35: #{tpu_custom_call.1} parent=5 // pred_region
      %s190 = ssub.s32 %s10, 1
      %s191 = smul.u32 32, %s15
      %p192 = scmp.lt.s32.totalorder %s191, 63
      %s193 = scalar_select %p192, %s191, 63
      %s194 = smul.addr %s193, 8
      %s195 = scalar_lea.vmem %s0, %s194
      %p196 = pneg %p36
      %p197 = pneg %p33
      %p198 = pneg %p57
      %p199 = pneg %p54
      %s200 = smul.u32 32, %s15
      %p201 = scmp.lt.s32.totalorder %s200, 63
      %s202 = scalar_select %p201, %s200, 63
      %s203 = smul.addr %s202, 4
      %s204 = scalar_lea.vmem %s2, %s203
      %p205 = pneg %p83
      %p206 = pneg %p80
      %s207 = smul.u32 32, %s15
      %p208 = scmp.lt.s32.totalorder %s207, 63
      %s209 = scalar_select %p208, %s207, 63
      %s210 = smul.addr %s209, 8
      %s211 = scalar_lea.vmem %s3, %s210
      %p212 = pneg %p109
      %p213 = pneg %p106
      %p214 = pneg %p135
      %p215 = pneg %p132
      %s216 = smul.u32 32, %s15
      %p217 = scmp.lt.s32.totalorder %s216, 63
      %s218 = scalar_select %p217, %s216, 63
      %s219 = smul.addr %s218, 2
      %s220 = smul.addr %s219, 8
      %s221 = scalar_lea.vmem %s4, %s220
      %s222 = smul.u32 32, %s15
      %p223 = scmp.lt.s32.totalorder %s222, 63
      %s224 = scalar_select %p223, %s222, 63
      %s225 = smul.addr %s224, 8
      %s226 = scalar_lea.vmem %s0, %s225
      %s227 = smul.u32 32, %s15
      %s228 = smul.u32 32, %s15
      %p229 = scmp.lt.s32.totalorder %s228, 63
      %s230 = scalar_select %p229, %s228, 63
      %s231 = smul.addr %s230, 4
      %s232 = scalar_lea.vmem %s2, %s231
      %s233 = smul.u32 32, %s15
      %s234 = smul.u32 32, %s15
      %p235 = scmp.lt.s32.totalorder %s234, 63
      %s236 = scalar_select %p235, %s234, 63
      %s237 = smul.addr %s236, 8
      %s238 = scalar_lea.vmem %s3, %s237
      %s239 = smul.u32 32, %s15
      %s240 = smul.u32 32, %s15
      %p241 = scmp.lt.s32.totalorder %s240, 63
      %s242 = scalar_select %p241, %s240, 63
      %s243 = smul.addr %s242, 2
      %s244 = smul.addr %s243, 8
      %s245 = scalar_lea.vmem %s4, %s244
      %s246 = smul.u32 32, %s15
      %v247 = vld [vmem:[%s226] sm:$0xff]
      %v248 = vld [vmem:[%s226 + $0x8] sm:$0xff]
      %v249 = vld [vmem:[%s226 + $0x10] sm:$0xff]
      %v250 = vld [vmem:[%s226 + $0x18] sm:$0xff]
      %v251 = vld [vmem:[%s226 + $0x20] sm:$0xff]
      %v252 = vld [vmem:[%s226 + $0x28] sm:$0xff]
      %v253 = vld [vmem:[%s226 + $0x30] sm:$0xff]
      %v254 = vld [vmem:[%s226 + $0x38] sm:$0xff]
      %v255 = vld [vmem:[%s226 + $0x40] sm:$0xff]
      %v256 = vld [vmem:[%s226 + $0x48] sm:$0xff]
      %v257 = vld [vmem:[%s226 + $0x50] sm:$0xff]
      %v258 = vld [vmem:[%s226 + $0x58] sm:$0xff]
      %v259 = vld [vmem:[%s226 + $0x60] sm:$0xff]
      %v260 = vld [vmem:[%s226 + $0x68] sm:$0xff]
      %v261 = vld [vmem:[%s226 + $0x70] sm:$0xff]
      %v262 = vld [vmem:[%s226 + $0x78] sm:$0xff]
      %v263 = vld [vmem:[%s226 + $0x80] sm:$0xff]
      %v264 = vld [vmem:[%s226 + $0x88] sm:$0xff]
      %v265 = vld [vmem:[%s226 + $0x90] sm:$0xff]
      %v266 = vld [vmem:[%s226 + $0x98] sm:$0xff]
      %v267 = vld [vmem:[%s226 + $0xa0] sm:$0xff]
      %v268 = vld [vmem:[%s226 + $0xa8] sm:$0xff]
      %v269 = vld [vmem:[%s226 + $0xb0] sm:$0xff]
      %v270 = vld [vmem:[%s226 + $0xb8] sm:$0xff]
      %v271 = vld [vmem:[%s226 + $0xc0] sm:$0xff]
      %v272 = vld [vmem:[%s226 + $0xc8] sm:$0xff]
      %v273 = vld [vmem:[%s226 + $0xd0] sm:$0xff]
      %v274 = vld [vmem:[%s226 + $0xd8] sm:$0xff]
      %v275 = vld [vmem:[%s226 + $0xe0] sm:$0xff]
      %v276 = vld [vmem:[%s226 + $0xe8] sm:$0xff]
      %v277 = vld [vmem:[%s226 + $0xf0] sm:$0xff]
      %v278 = vld [vmem:[%s226 + $0xf8] sm:$0xff]
      %v279 = vld [vmem:[%s1] sm:$0xf]
      %280 = vset.pattern.permute.xlu0 0
      %281 = vperm.xlu0 %280, %v247
      %v282 = vpop.permute.xlu0 %281
      %283 = vset.pattern.permute.xlu0 0
      %284 = vperm.xlu0 %283, %v248
      %v285 = vpop.permute.xlu0 %284
      %286 = vset.pattern.permute.xlu0 0
      %287 = vperm.xlu0 %286, %v249
      %v288 = vpop.permute.xlu0 %287
      %289 = vset.pattern.permute.xlu0 0
      %290 = vperm.xlu0 %289, %v250
      %v291 = vpop.permute.xlu0 %290
      %292 = vset.pattern.permute.xlu0 0
      %293 = vperm.xlu0 %292, %v251
      %v294 = vpop.permute.xlu0 %293
      %295 = vset.pattern.permute.xlu0 0
      %296 = vperm.xlu0 %295, %v252
      %v297 = vpop.permute.xlu0 %296
      %298 = vset.pattern.permute.xlu0 0
      %299 = vperm.xlu0 %298, %v253
      %v300 = vpop.permute.xlu0 %299
      %301 = vset.pattern.permute.xlu0 0
      %302 = vperm.xlu0 %301, %v254
      %v303 = vpop.permute.xlu0 %302
      %304 = vset.pattern.permute.xlu0 0
      %305 = vperm.xlu0 %304, %v255
      %v306 = vpop.permute.xlu0 %305
      %307 = vset.pattern.permute.xlu0 0
      %308 = vperm.xlu0 %307, %v256
      %v309 = vpop.permute.xlu0 %308
      %310 = vset.pattern.permute.xlu0 0
      %311 = vperm.xlu0 %310, %v257
      %v312 = vpop.permute.xlu0 %311
      %313 = vset.pattern.permute.xlu0 0
      %314 = vperm.xlu0 %313, %v258
      %v315 = vpop.permute.xlu0 %314
      %316 = vset.pattern.permute.xlu0 0
      %317 = vperm.xlu0 %316, %v259
      %v318 = vpop.permute.xlu0 %317
      %319 = vset.pattern.permute.xlu0 0
      %320 = vperm.xlu0 %319, %v260
      %v321 = vpop.permute.xlu0 %320
      %322 = vset.pattern.permute.xlu0 0
      %323 = vperm.xlu0 %322, %v261
      %v324 = vpop.permute.xlu0 %323
      %325 = vset.pattern.permute.xlu0 0
      %326 = vperm.xlu0 %325, %v262
      %v327 = vpop.permute.xlu0 %326
      %328 = vset.pattern.permute.xlu0 0
      %329 = vperm.xlu0 %328, %v263
      %v330 = vpop.permute.xlu0 %329
      %331 = vset.pattern.permute.xlu0 0
      %332 = vperm.xlu0 %331, %v264
      %v333 = vpop.permute.xlu0 %332
      %334 = vset.pattern.permute.xlu0 0
      %335 = vperm.xlu0 %334, %v265
      %v336 = vpop.permute.xlu0 %335
      %337 = vset.pattern.permute.xlu0 0
      %338 = vperm.xlu0 %337, %v266
      %v339 = vpop.permute.xlu0 %338
      %340 = vset.pattern.permute.xlu0 0
      %341 = vperm.xlu0 %340, %v267
      %v342 = vpop.permute.xlu0 %341
      %343 = vset.pattern.permute.xlu0 0
      %344 = vperm.xlu0 %343, %v268
      %v345 = vpop.permute.xlu0 %344
      %346 = vset.pattern.permute.xlu0 0
      %347 = vperm.xlu0 %346, %v269
      %v348 = vpop.permute.xlu0 %347
      %349 = vset.pattern.permute.xlu0 0
      %350 = vperm.xlu0 %349, %v270
      %v351 = vpop.permute.xlu0 %350
      %352 = vset.pattern.permute.xlu0 0
      %353 = vperm.xlu0 %352, %v271
      %v354 = vpop.permute.xlu0 %353
      %355 = vset.pattern.permute.xlu0 0
      %356 = vperm.xlu0 %355, %v272
      %v357 = vpop.permute.xlu0 %356
      %358 = vset.pattern.permute.xlu0 0
      %359 = vperm.xlu0 %358, %v273
      %v360 = vpop.permute.xlu0 %359
      %361 = vset.pattern.permute.xlu0 0
      %362 = vperm.xlu0 %361, %v274
      %v363 = vpop.permute.xlu0 %362
      %364 = vset.pattern.permute.xlu0 0
      %365 = vperm.xlu0 %364, %v275
      %v366 = vpop.permute.xlu0 %365
      %367 = vset.pattern.permute.xlu0 0
      %368 = vperm.xlu0 %367, %v276
      %v369 = vpop.permute.xlu0 %368
      %370 = vset.pattern.permute.xlu0 0
      %371 = vperm.xlu0 %370, %v277
      %v372 = vpop.permute.xlu0 %371
      %373 = vset.pattern.permute.xlu0 0
      %374 = vperm.xlu0 %373, %v278
      %v375 = vpop.permute.xlu0 %374
      %376 = vset.pattern.permute.xlu0 1
      %377 = vperm.xlu0 %376, %v247
      %v378 = vpop.permute.xlu0 %377
      %379 = vset.pattern.permute.xlu0 1
      %380 = vperm.xlu0 %379, %v248
      %v381 = vpop.permute.xlu0 %380
      %382 = vset.pattern.permute.xlu0 1
      %383 = vperm.xlu0 %382, %v249
      %v384 = vpop.permute.xlu0 %383
      %385 = vset.pattern.permute.xlu0 1
      %386 = vperm.xlu0 %385, %v250
      %v387 = vpop.permute.xlu0 %386
      %388 = vset.pattern.permute.xlu0 1
      %389 = vperm.xlu0 %388, %v251
      %v390 = vpop.permute.xlu0 %389
      %391 = vset.pattern.permute.xlu0 1
      %392 = vperm.xlu0 %391, %v252
      %v393 = vpop.permute.xlu0 %392
      %394 = vset.pattern.permute.xlu0 1
      %395 = vperm.xlu0 %394, %v253
      %v396 = vpop.permute.xlu0 %395
      %397 = vset.pattern.permute.xlu0 1
      %398 = vperm.xlu0 %397, %v254
      %v399 = vpop.permute.xlu0 %398
      %400 = vset.pattern.permute.xlu0 1
      %401 = vperm.xlu0 %400, %v255
      %v402 = vpop.permute.xlu0 %401
      %403 = vset.pattern.permute.xlu0 1
      %404 = vperm.xlu0 %403, %v256
      %v405 = vpop.permute.xlu0 %404
      %406 = vset.pattern.permute.xlu0 1
      %407 = vperm.xlu0 %406, %v257
      %v408 = vpop.permute.xlu0 %407
      %409 = vset.pattern.permute.xlu0 1
      %410 = vperm.xlu0 %409, %v258
      %v411 = vpop.permute.xlu0 %410
      %412 = vset.pattern.permute.xlu0 1
      %413 = vperm.xlu0 %412, %v259
      %v414 = vpop.permute.xlu0 %413
      %415 = vset.pattern.permute.xlu0 1
      %416 = vperm.xlu0 %415, %v260
      %v417 = vpop.permute.xlu0 %416
      %418 = vset.pattern.permute.xlu0 1
      %419 = vperm.xlu0 %418, %v261
      %v420 = vpop.permute.xlu0 %419
      %421 = vset.pattern.permute.xlu0 1
      %422 = vperm.xlu0 %421, %v262
      %v423 = vpop.permute.xlu0 %422
      %424 = vset.pattern.permute.xlu0 1
      %425 = vperm.xlu0 %424, %v263
      %v426 = vpop.permute.xlu0 %425
      %427 = vset.pattern.permute.xlu0 1
      %428 = vperm.xlu0 %427, %v264
      %v429 = vpop.permute.xlu0 %428
      %430 = vset.pattern.permute.xlu0 1
      %431 = vperm.xlu0 %430, %v265
      %v432 = vpop.permute.xlu0 %431
      %433 = vset.pattern.permute.xlu0 1
      %434 = vperm.xlu0 %433, %v266
      %v435 = vpop.permute.xlu0 %434
      %436 = vset.pattern.permute.xlu0 1
      %437 = vperm.xlu0 %436, %v267
      %v438 = vpop.permute.xlu0 %437
      %439 = vset.pattern.permute.xlu0 1
      %440 = vperm.xlu0 %439, %v268
      %v441 = vpop.permute.xlu0 %440
      %442 = vset.pattern.permute.xlu0 1
      %443 = vperm.xlu0 %442, %v269
      %v444 = vpop.permute.xlu0 %443
      %445 = vset.pattern.permute.xlu0 1
      %446 = vperm.xlu0 %445, %v270
      %v447 = vpop.permute.xlu0 %446
      %448 = vset.pattern.permute.xlu0 1
      %449 = vperm.xlu0 %448, %v271
      %v450 = vpop.permute.xlu0 %449
      %451 = vset.pattern.permute.xlu0 1
      %452 = vperm.xlu0 %451, %v272
      %v453 = vpop.permute.xlu0 %452
      %454 = vset.pattern.permute.xlu0 1
      %455 = vperm.xlu0 %454, %v273
      %v456 = vpop.permute.xlu0 %455
      %457 = vset.pattern.permute.xlu0 1
      %458 = vperm.xlu0 %457, %v274
      %v459 = vpop.permute.xlu0 %458
      %460 = vset.pattern.permute.xlu0 1
      %461 = vperm.xlu0 %460, %v275
      %v462 = vpop.permute.xlu0 %461
      %463 = vset.pattern.permute.xlu0 1
      %464 = vperm.xlu0 %463, %v276
      %v465 = vpop.permute.xlu0 %464
      %466 = vset.pattern.permute.xlu0 1
      %467 = vperm.xlu0 %466, %v277
      %v468 = vpop.permute.xlu0 %467
      %469 = vset.pattern.permute.xlu0 1
      %470 = vperm.xlu0 %469, %v278
      %v471 = vpop.permute.xlu0 %470
      %472 = vset.pattern.permute.xlu0 2
      %473 = vperm.xlu0 %472, %v247
      %v474 = vpop.permute.xlu0 %473
      %475 = vset.pattern.permute.xlu0 2
      %476 = vperm.xlu0 %475, %v248
      %v477 = vpop.permute.xlu0 %476
      %478 = vset.pattern.permute.xlu0 2
      %479 = vperm.xlu0 %478, %v249
      %v480 = vpop.permute.xlu0 %479
      %481 = vset.pattern.permute.xlu0 2
      %482 = vperm.xlu0 %481, %v250
      %v483 = vpop.permute.xlu0 %482
      %484 = vset.pattern.permute.xlu0 2
      %485 = vperm.xlu0 %484, %v251
      %v486 = vpop.permute.xlu0 %485
      %487 = vset.pattern.permute.xlu0 2
      %488 = vperm.xlu0 %487, %v252
      %v489 = vpop.permute.xlu0 %488
      %490 = vset.pattern.permute.xlu0 2
      %491 = vperm.xlu0 %490, %v253
      %v492 = vpop.permute.xlu0 %491
      %493 = vset.pattern.permute.xlu0 2
      %494 = vperm.xlu0 %493, %v254
      %v495 = vpop.permute.xlu0 %494
      %496 = vset.pattern.permute.xlu0 2
      %497 = vperm.xlu0 %496, %v255
      %v498 = vpop.permute.xlu0 %497
      %499 = vset.pattern.permute.xlu0 2
      %500 = vperm.xlu0 %499, %v256
      %v501 = vpop.permute.xlu0 %500
      %502 = vset.pattern.permute.xlu0 2
      %503 = vperm.xlu0 %502, %v257
      %v504 = vpop.permute.xlu0 %503
      %505 = vset.pattern.permute.xlu0 2
      %506 = vperm.xlu0 %505, %v258
      %v507 = vpop.permute.xlu0 %506
      %508 = vset.pattern.permute.xlu0 2
      %509 = vperm.xlu0 %508, %v259
      %v510 = vpop.permute.xlu0 %509
      %511 = vset.pattern.permute.xlu0 2
      %512 = vperm.xlu0 %511, %v260
      %v513 = vpop.permute.xlu0 %512
      %514 = vset.pattern.permute.xlu0 2
      %515 = vperm.xlu0 %514, %v261
      %v516 = vpop.permute.xlu0 %515
      %517 = vset.pattern.permute.xlu0 2
      %518 = vperm.xlu0 %517, %v262
      %v519 = vpop.permute.xlu0 %518
      %520 = vset.pattern.permute.xlu0 2
      %521 = vperm.xlu0 %520, %v263
      %v522 = vpop.permute.xlu0 %521
      %523 = vset.pattern.permute.xlu0 2
      %524 = vperm.xlu0 %523, %v264
      %v525 = vpop.permute.xlu0 %524
      %526 = vset.pattern.permute.xlu0 2
      %527 = vperm.xlu0 %526, %v265
      %v528 = vpop.permute.xlu0 %527
      %529 = vset.pattern.permute.xlu0 2
      %530 = vperm.xlu0 %529, %v266
      %v531 = vpop.permute.xlu0 %530
      %532 = vset.pattern.permute.xlu0 2
      %533 = vperm.xlu0 %532, %v267
      %v534 = vpop.permute.xlu0 %533
      %535 = vset.pattern.permute.xlu0 2
      %536 = vperm.xlu0 %535, %v268
      %v537 = vpop.permute.xlu0 %536
      %538 = vset.pattern.permute.xlu0 2
      %539 = vperm.xlu0 %538, %v269
      %v540 = vpop.permute.xlu0 %539
      %541 = vset.pattern.permute.xlu0 2
      %542 = vperm.xlu0 %541, %v270
      %v543 = vpop.permute.xlu0 %542
      %544 = vset.pattern.permute.xlu0 2
      %545 = vperm.xlu0 %544, %v271
      %v546 = vpop.permute.xlu0 %545
      %547 = vset.pattern.permute.xlu0 2
      %548 = vperm.xlu0 %547, %v272
      %v549 = vpop.permute.xlu0 %548
      %550 = vset.pattern.permute.xlu0 2
      %551 = vperm.xlu0 %550, %v273
      %v552 = vpop.permute.xlu0 %551
      %553 = vset.pattern.permute.xlu0 2
      %554 = vperm.xlu0 %553, %v274
      %v555 = vpop.permute.xlu0 %554
      %556 = vset.pattern.permute.xlu0 2
      %557 = vperm.xlu0 %556, %v275
      %v558 = vpop.permute.xlu0 %557
      %559 = vset.pattern.permute.xlu0 2
      %560 = vperm.xlu0 %559, %v276
      %v561 = vpop.permute.xlu0 %560
      %562 = vset.pattern.permute.xlu0 2
      %563 = vperm.xlu0 %562, %v277
      %v564 = vpop.permute.xlu0 %563
      %565 = vset.pattern.permute.xlu0 2
      %566 = vperm.xlu0 %565, %v278
      %v567 = vpop.permute.xlu0 %566
      %vm568 = vcmask 64512
      %v569 = vsel %vm568, %v282, %v378
      %v570 = vsel %vm568, %v285, %v381
      %v571 = vsel %vm568, %v288, %v384
      %v572 = vsel %vm568, %v291, %v387
      %v573 = vsel %vm568, %v294, %v390
      %v574 = vsel %vm568, %v297, %v393
      %v575 = vsel %vm568, %v300, %v396
      %v576 = vsel %vm568, %v303, %v399
      %v577 = vsel %vm568, %v306, %v402
      %v578 = vsel %vm568, %v309, %v405
      %v579 = vsel %vm568, %v312, %v408
      %v580 = vsel %vm568, %v315, %v411
      %v581 = vsel %vm568, %v318, %v414
      %v582 = vsel %vm568, %v321, %v417
      %v583 = vsel %vm568, %v324, %v420
      %v584 = vsel %vm568, %v327, %v423
      %v585 = vsel %vm568, %v330, %v426
      %v586 = vsel %vm568, %v333, %v429
      %v587 = vsel %vm568, %v336, %v432
      %v588 = vsel %vm568, %v339, %v435
      %v589 = vsel %vm568, %v342, %v438
      %v590 = vsel %vm568, %v345, %v441
      %v591 = vsel %vm568, %v348, %v444
      %v592 = vsel %vm568, %v351, %v447
      %v593 = vsel %vm568, %v354, %v450
      %v594 = vsel %vm568, %v357, %v453
      %v595 = vsel %vm568, %v360, %v456
      %v596 = vsel %vm568, %v363, %v459
      %v597 = vsel %vm568, %v366, %v462
      %v598 = vsel %vm568, %v369, %v465
      %v599 = vsel %vm568, %v372, %v468
      %v600 = vsel %vm568, %v375, %v471
      %vm601 = vcmask 130048
      %v602 = vsel %vm601, %v569, %v474
      %v603 = vsel %vm601, %v570, %v477
      %v604 = vsel %vm601, %v571, %v480
      %v605 = vsel %vm601, %v572, %v483
      %v606 = vsel %vm601, %v573, %v486
      %v607 = vsel %vm601, %v574, %v489
      %v608 = vsel %vm601, %v575, %v492
      %v609 = vsel %vm601, %v576, %v495
      %v610 = vsel %vm601, %v577, %v498
      %v611 = vsel %vm601, %v578, %v501
      %v612 = vsel %vm601, %v579, %v504
      %v613 = vsel %vm601, %v580, %v507
      %v614 = vsel %vm601, %v581, %v510
      %v615 = vsel %vm601, %v582, %v513
      %v616 = vsel %vm601, %v583, %v516
      %v617 = vsel %vm601, %v584, %v519
      %v618 = vsel %vm601, %v585, %v522
      %v619 = vsel %vm601, %v586, %v525
      %v620 = vsel %vm601, %v587, %v528
      %v621 = vsel %vm601, %v588, %v531
      %v622 = vsel %vm601, %v589, %v534
      %v623 = vsel %vm601, %v590, %v537
      %v624 = vsel %vm601, %v591, %v540
      %v625 = vsel %vm601, %v592, %v543
      %v626 = vsel %vm601, %v593, %v546
      %v627 = vsel %vm601, %v594, %v549
      %v628 = vsel %vm601, %v595, %v552
      %v629 = vsel %vm601, %v596, %v555
      %v630 = vsel %vm601, %v597, %v558
      %v631 = vsel %vm601, %v598, %v561
      %v632 = vsel %vm601, %v599, %v564
      %v633 = vsel %vm601, %v600, %v567
      %vm634 = vcmp.eq.s32.totalorder %v602, 0
      %vm635 = vcmp.eq.s32.totalorder %v603, 0
      %vm636 = vcmp.eq.s32.totalorder %v604, 0
      %vm637 = vcmp.eq.s32.totalorder %v605, 0
      %vm638 = vcmp.eq.s32.totalorder %v606, 0
      %vm639 = vcmp.eq.s32.totalorder %v607, 0
      %vm640 = vcmp.eq.s32.totalorder %v608, 0
      %vm641 = vcmp.eq.s32.totalorder %v609, 0
      %vm642 = vcmp.eq.s32.totalorder %v610, 0
      %vm643 = vcmp.eq.s32.totalorder %v611, 0
      %vm644 = vcmp.eq.s32.totalorder %v612, 0
      %vm645 = vcmp.eq.s32.totalorder %v613, 0
      %vm646 = vcmp.eq.s32.totalorder %v614, 0
      %vm647 = vcmp.eq.s32.totalorder %v615, 0
      %vm648 = vcmp.eq.s32.totalorder %v616, 0
      %vm649 = vcmp.eq.s32.totalorder %v617, 0
      %vm650 = vcmp.eq.s32.totalorder %v618, 0
      %vm651 = vcmp.eq.s32.totalorder %v619, 0
      %vm652 = vcmp.eq.s32.totalorder %v620, 0
      %vm653 = vcmp.eq.s32.totalorder %v621, 0
      %vm654 = vcmp.eq.s32.totalorder %v622, 0
      %vm655 = vcmp.eq.s32.totalorder %v623, 0
      %vm656 = vcmp.eq.s32.totalorder %v624, 0
      %vm657 = vcmp.eq.s32.totalorder %v625, 0
      %vm658 = vcmp.eq.s32.totalorder %v626, 0
      %vm659 = vcmp.eq.s32.totalorder %v627, 0
      %vm660 = vcmp.eq.s32.totalorder %v628, 0
      %vm661 = vcmp.eq.s32.totalorder %v629, 0
      %vm662 = vcmp.eq.s32.totalorder %v630, 0
      %vm663 = vcmp.eq.s32.totalorder %v631, 0
      %vm664 = vcmp.eq.s32.totalorder %v632, 0
      %vm665 = vcmp.eq.s32.totalorder %v633, 0
      %v666 = vlaneseq
      %v667 = vshrl.u32 %v666, 7
      %v668 = vsub.s32 0, %v667
      %v669 = vrot.slane %v279, %v668
      %v670 = vsel %vm634, %v669, 0.0
      %v671 = vsel %vm635, %v669, 0.0
      %v672 = vsel %vm636, %v669, 0.0
      %v673 = vsel %vm637, %v669, 0.0
      %v674 = vsel %vm638, %v669, 0.0
      %v675 = vsel %vm639, %v669, 0.0
      %v676 = vsel %vm640, %v669, 0.0
      %v677 = vsel %vm641, %v669, 0.0
      %v678 = vsel %vm642, %v669, 0.0
      %v679 = vsel %vm643, %v669, 0.0
      %v680 = vsel %vm644, %v669, 0.0
      %v681 = vsel %vm645, %v669, 0.0
      %v682 = vsel %vm646, %v669, 0.0
      %v683 = vsel %vm647, %v669, 0.0
      %v684 = vsel %vm648, %v669, 0.0
      %v685 = vsel %vm649, %v669, 0.0
      %v686 = vsel %vm650, %v669, 0.0
      %v687 = vsel %vm651, %v669, 0.0
      %v688 = vsel %vm652, %v669, 0.0
      %v689 = vsel %vm653, %v669, 0.0
      %v690 = vsel %vm654, %v669, 0.0
      %v691 = vsel %vm655, %v669, 0.0
      %v692 = vsel %vm656, %v669, 0.0
      %v693 = vsel %vm657, %v669, 0.0
      %v694 = vsel %vm658, %v669, 0.0
      %v695 = vsel %vm659, %v669, 0.0
      %v696 = vsel %vm660, %v669, 0.0
      %v697 = vsel %vm661, %v669, 0.0
      %v698 = vsel %vm662, %v669, 0.0
      %v699 = vsel %vm663, %v669, 0.0
      %v700 = vsel %vm664, %v669, 0.0
      %v701 = vsel %vm665, %v669, 0.0
      %vm702 = vcmp.eq.s32.totalorder %v602, 1
      %vm703 = vcmp.eq.s32.totalorder %v603, 1
      %vm704 = vcmp.eq.s32.totalorder %v604, 1
      %vm705 = vcmp.eq.s32.totalorder %v605, 1
      %vm706 = vcmp.eq.s32.totalorder %v606, 1
      %vm707 = vcmp.eq.s32.totalorder %v607, 1
      %vm708 = vcmp.eq.s32.totalorder %v608, 1
      %vm709 = vcmp.eq.s32.totalorder %v609, 1
      %vm710 = vcmp.eq.s32.totalorder %v610, 1
      %vm711 = vcmp.eq.s32.totalorder %v611, 1
      %vm712 = vcmp.eq.s32.totalorder %v612, 1
      %vm713 = vcmp.eq.s32.totalorder %v613, 1
      %vm714 = vcmp.eq.s32.totalorder %v614, 1
      %vm715 = vcmp.eq.s32.totalorder %v615, 1
      %vm716 = vcmp.eq.s32.totalorder %v616, 1
      %vm717 = vcmp.eq.s32.totalorder %v617, 1
      %vm718 = vcmp.eq.s32.totalorder %v618, 1
      %vm719 = vcmp.eq.s32.totalorder %v619, 1
      %vm720 = vcmp.eq.s32.totalorder %v620, 1
      %vm721 = vcmp.eq.s32.totalorder %v621, 1
      %vm722 = vcmp.eq.s32.totalorder %v622, 1
      %vm723 = vcmp.eq.s32.totalorder %v623, 1
      %vm724 = vcmp.eq.s32.totalorder %v624, 1
      %vm725 = vcmp.eq.s32.totalorder %v625, 1
      %vm726 = vcmp.eq.s32.totalorder %v626, 1
      %vm727 = vcmp.eq.s32.totalorder %v627, 1
      %vm728 = vcmp.eq.s32.totalorder %v628, 1
      %vm729 = vcmp.eq.s32.totalorder %v629, 1
      %vm730 = vcmp.eq.s32.totalorder %v630, 1
      %vm731 = vcmp.eq.s32.totalorder %v631, 1
      %vm732 = vcmp.eq.s32.totalorder %v632, 1
      %vm733 = vcmp.eq.s32.totalorder %v633, 1
      %v734 = vlaneseq
      %v735 = vshrl.u32 %v734, 7
      %v736 = vsub.s32 1, %v735
      %v737 = vrot.slane %v279, %v736
      %v738 = vsel %vm702, %v737, %v670
      %v739 = vsel %vm703, %v737, %v671
      %v740 = vsel %vm704, %v737, %v672
      %v741 = vsel %vm705, %v737, %v673
      %v742 = vsel %vm706, %v737, %v674
      %v743 = vsel %vm707, %v737, %v675
      %v744 = vsel %vm708, %v737, %v676
      %v745 = vsel %vm709, %v737, %v677
      %v746 = vsel %vm710, %v737, %v678
      %v747 = vsel %vm711, %v737, %v679
      %v748 = vsel %vm712, %v737, %v680
      %v749 = vsel %vm713, %v737, %v681
      %v750 = vsel %vm714, %v737, %v682
      %v751 = vsel %vm715, %v737, %v683
      %v752 = vsel %vm716, %v737, %v684
      %v753 = vsel %vm717, %v737, %v685
      %v754 = vsel %vm718, %v737, %v686
      %v755 = vsel %vm719, %v737, %v687
      %v756 = vsel %vm720, %v737, %v688
      %v757 = vsel %vm721, %v737, %v689
      %v758 = vsel %vm722, %v737, %v690
      %v759 = vsel %vm723, %v737, %v691
      %v760 = vsel %vm724, %v737, %v692
      %v761 = vsel %vm725, %v737, %v693
      %v762 = vsel %vm726, %v737, %v694
      %v763 = vsel %vm727, %v737, %v695
      %v764 = vsel %vm728, %v737, %v696
      %v765 = vsel %vm729, %v737, %v697
      %v766 = vsel %vm730, %v737, %v698
      %v767 = vsel %vm731, %v737, %v699
      %v768 = vsel %vm732, %v737, %v700
      %v769 = vsel %vm733, %v737, %v701
      %vm770 = vcmp.eq.s32.totalorder %v602, 2
      %vm771 = vcmp.eq.s32.totalorder %v603, 2
      %vm772 = vcmp.eq.s32.totalorder %v604, 2
      %vm773 = vcmp.eq.s32.totalorder %v605, 2
      %vm774 = vcmp.eq.s32.totalorder %v606, 2
      %vm775 = vcmp.eq.s32.totalorder %v607, 2
      %vm776 = vcmp.eq.s32.totalorder %v608, 2
      %vm777 = vcmp.eq.s32.totalorder %v609, 2
      %vm778 = vcmp.eq.s32.totalorder %v610, 2
      %vm779 = vcmp.eq.s32.totalorder %v611, 2
      %vm780 = vcmp.eq.s32.totalorder %v612, 2
      %vm781 = vcmp.eq.s32.totalorder %v613, 2
      %vm782 = vcmp.eq.s32.totalorder %v614, 2
      %vm783 = vcmp.eq.s32.totalorder %v615, 2
      %vm784 = vcmp.eq.s32.totalorder %v616, 2
      %vm785 = vcmp.eq.s32.totalorder %v617, 2
      %vm786 = vcmp.eq.s32.totalorder %v618, 2
      %vm787 = vcmp.eq.s32.totalorder %v619, 2
      %vm788 = vcmp.eq.s32.totalorder %v620, 2
      %vm789 = vcmp.eq.s32.totalorder %v621, 2
      %vm790 = vcmp.eq.s32.totalorder %v622, 2
      %vm791 = vcmp.eq.s32.totalorder %v623, 2
      %vm792 = vcmp.eq.s32.totalorder %v624, 2
      %vm793 = vcmp.eq.s32.totalorder %v625, 2
      %vm794 = vcmp.eq.s32.totalorder %v626, 2
      %vm795 = vcmp.eq.s32.totalorder %v627, 2
      %vm796 = vcmp.eq.s32.totalorder %v628, 2
      %vm797 = vcmp.eq.s32.totalorder %v629, 2
      %vm798 = vcmp.eq.s32.totalorder %v630, 2
      %vm799 = vcmp.eq.s32.totalorder %v631, 2
      %vm800 = vcmp.eq.s32.totalorder %v632, 2
      %vm801 = vcmp.eq.s32.totalorder %v633, 2
      %v802 = vlaneseq
      %v803 = vshrl.u32 %v802, 7
      %v804 = vsub.s32 2, %v803
      %v805 = vrot.slane %v279, %v804
      %v806 = vsel %vm770, %v805, %v738
      %v807 = vsel %vm771, %v805, %v739
      %v808 = vsel %vm772, %v805, %v740
      %v809 = vsel %vm773, %v805, %v741
      %v810 = vsel %vm774, %v805, %v742
      %v811 = vsel %vm775, %v805, %v743
      %v812 = vsel %vm776, %v805, %v744
      %v813 = vsel %vm777, %v805, %v745
      %v814 = vsel %vm778, %v805, %v746
      %v815 = vsel %vm779, %v805, %v747
      %v816 = vsel %vm780, %v805, %v748
      %v817 = vsel %vm781, %v805, %v749
      %v818 = vsel %vm782, %v805, %v750
      %v819 = vsel %vm783, %v805, %v751
      %v820 = vsel %vm784, %v805, %v752
      %v821 = vsel %vm785, %v805, %v753
      %v822 = vsel %vm786, %v805, %v754
      %v823 = vsel %vm787, %v805, %v755
      %v824 = vsel %vm788, %v805, %v756
      %v825 = vsel %vm789, %v805, %v757
      %v826 = vsel %vm790, %v805, %v758
      %v827 = vsel %vm791, %v805, %v759
      %v828 = vsel %vm792, %v805, %v760
      %v829 = vsel %vm793, %v805, %v761
      %v830 = vsel %vm794, %v805, %v762
      %v831 = vsel %vm795, %v805, %v763
      %v832 = vsel %vm796, %v805, %v764
      %v833 = vsel %vm797, %v805, %v765
      %v834 = vsel %vm798, %v805, %v766
      %v835 = vsel %vm799, %v805, %v767
      %v836 = vsel %vm800, %v805, %v768
      %v837 = vsel %vm801, %v805, %v769
      %vm838 = vcmp.eq.s32.totalorder %v602, 3
      %vm839 = vcmp.eq.s32.totalorder %v603, 3
      %vm840 = vcmp.eq.s32.totalorder %v604, 3
      %vm841 = vcmp.eq.s32.totalorder %v605, 3
      %vm842 = vcmp.eq.s32.totalorder %v606, 3
      %vm843 = vcmp.eq.s32.totalorder %v607, 3
      %vm844 = vcmp.eq.s32.totalorder %v608, 3
      %vm845 = vcmp.eq.s32.totalorder %v609, 3
      %vm846 = vcmp.eq.s32.totalorder %v610, 3
      %vm847 = vcmp.eq.s32.totalorder %v611, 3
      %vm848 = vcmp.eq.s32.totalorder %v612, 3
      %vm849 = vcmp.eq.s32.totalorder %v613, 3
      %vm850 = vcmp.eq.s32.totalorder %v614, 3
      %vm851 = vcmp.eq.s32.totalorder %v615, 3
      %vm852 = vcmp.eq.s32.totalorder %v616, 3
      %vm853 = vcmp.eq.s32.totalorder %v617, 3
      %vm854 = vcmp.eq.s32.totalorder %v618, 3
      %vm855 = vcmp.eq.s32.totalorder %v619, 3
      %vm856 = vcmp.eq.s32.totalorder %v620, 3
      %vm857 = vcmp.eq.s32.totalorder %v621, 3
      %vm858 = vcmp.eq.s32.totalorder %v622, 3
      %vm859 = vcmp.eq.s32.totalorder %v623, 3
      %vm860 = vcmp.eq.s32.totalorder %v624, 3
      %vm861 = vcmp.eq.s32.totalorder %v625, 3
      %vm862 = vcmp.eq.s32.totalorder %v626, 3
      %vm863 = vcmp.eq.s32.totalorder %v627, 3
      %vm864 = vcmp.eq.s32.totalorder %v628, 3
      %vm865 = vcmp.eq.s32.totalorder %v629, 3
      %vm866 = vcmp.eq.s32.totalorder %v630, 3
      %vm867 = vcmp.eq.s32.totalorder %v631, 3
      %vm868 = vcmp.eq.s32.totalorder %v632, 3
      %vm869 = vcmp.eq.s32.totalorder %v633, 3
      %v870 = vlaneseq
      %v871 = vshrl.u32 %v870, 7
      %v872 = vsub.s32 3, %v871
      %v873 = vrot.slane %v279, %v872
      %v874 = vsel %vm838, %v873, %v806
      %v875 = vsel %vm839, %v873, %v807
      %v876 = vsel %vm840, %v873, %v808
      %v877 = vsel %vm841, %v873, %v809
      %v878 = vsel %vm842, %v873, %v810
      %v879 = vsel %vm843, %v873, %v811
      %v880 = vsel %vm844, %v873, %v812
      %v881 = vsel %vm845, %v873, %v813
      %v882 = vsel %vm846, %v873, %v814
      %v883 = vsel %vm847, %v873, %v815
      %v884 = vsel %vm848, %v873, %v816
      %v885 = vsel %vm849, %v873, %v817
      %v886 = vsel %vm850, %v873, %v818
      %v887 = vsel %vm851, %v873, %v819
      %v888 = vsel %vm852, %v873, %v820
      %v889 = vsel %vm853, %v873, %v821
      %v890 = vsel %vm854, %v873, %v822
      %v891 = vsel %vm855, %v873, %v823
      %v892 = vsel %vm856, %v873, %v824
      %v893 = vsel %vm857, %v873, %v825
      %v894 = vsel %vm858, %v873, %v826
      %v895 = vsel %vm859, %v873, %v827
      %v896 = vsel %vm860, %v873, %v828
      %v897 = vsel %vm861, %v873, %v829
      %v898 = vsel %vm862, %v873, %v830
      %v899 = vsel %vm863, %v873, %v831
      %v900 = vsel %vm864, %v873, %v832
      %v901 = vsel %vm865, %v873, %v833
      %v902 = vsel %vm866, %v873, %v834
      %v903 = vsel %vm867, %v873, %v835
      %v904 = vsel %vm868, %v873, %v836
      %v905 = vsel %vm869, %v873, %v837
      %v906 = vld [vmem:[%s232] sm:$0xf]
      %v907 = vld [vmem:[%s232 + $0x4] sm:$0xf]
      %v908 = vld [vmem:[%s232 + $0x8] sm:$0xf]
      %v909 = vld [vmem:[%s232 + $0xc] sm:$0xf]
      %v910 = vld [vmem:[%s232 + $0x10] sm:$0xf]
      %v911 = vld [vmem:[%s232 + $0x14] sm:$0xf]
      %v912 = vld [vmem:[%s232 + $0x18] sm:$0xf]
      %v913 = vld [vmem:[%s232 + $0x1c] sm:$0xf]
      %v914 = vld [vmem:[%s232 + $0x20] sm:$0xf]
      %v915 = vld [vmem:[%s232 + $0x24] sm:$0xf]
      %v916 = vld [vmem:[%s232 + $0x28] sm:$0xf]
      %v917 = vld [vmem:[%s232 + $0x2c] sm:$0xf]
      %v918 = vld [vmem:[%s232 + $0x30] sm:$0xf]
      %v919 = vld [vmem:[%s232 + $0x34] sm:$0xf]
      %v920 = vld [vmem:[%s232 + $0x38] sm:$0xf]
      %v921 = vld [vmem:[%s232 + $0x3c] sm:$0xf]
      %v922 = vld [vmem:[%s232 + $0x40] sm:$0xf]
      %v923 = vld [vmem:[%s232 + $0x44] sm:$0xf]
      %v924 = vld [vmem:[%s232 + $0x48] sm:$0xf]
      %v925 = vld [vmem:[%s232 + $0x4c] sm:$0xf]
      %v926 = vld [vmem:[%s232 + $0x50] sm:$0xf]
      %v927 = vld [vmem:[%s232 + $0x54] sm:$0xf]
      %v928 = vld [vmem:[%s232 + $0x58] sm:$0xf]
      %v929 = vld [vmem:[%s232 + $0x5c] sm:$0xf]
      %v930 = vld [vmem:[%s232 + $0x60] sm:$0xf]
      %v931 = vld [vmem:[%s232 + $0x64] sm:$0xf]
      %v932 = vld [vmem:[%s232 + $0x68] sm:$0xf]
      %v933 = vld [vmem:[%s232 + $0x6c] sm:$0xf]
      %v934 = vld [vmem:[%s232 + $0x70] sm:$0xf]
      %v935 = vld [vmem:[%s232 + $0x74] sm:$0xf]
      %v936 = vld [vmem:[%s232 + $0x78] sm:$0xf]
      %v937 = vld [vmem:[%s232 + $0x7c] sm:$0xf]
      %v938 = vunpack.c.l.bf16 %v906
      %v939 = vunpack.c.l.bf16 %v907
      %v940 = vunpack.c.l.bf16 %v908
      %v941 = vunpack.c.l.bf16 %v909
      %v942 = vunpack.c.l.bf16 %v910
      %v943 = vunpack.c.l.bf16 %v911
      %v944 = vunpack.c.l.bf16 %v912
      %v945 = vunpack.c.l.bf16 %v913
      %v946 = vunpack.c.l.bf16 %v914
      %v947 = vunpack.c.l.bf16 %v915
      %v948 = vunpack.c.l.bf16 %v916
      %v949 = vunpack.c.l.bf16 %v917
      %v950 = vunpack.c.l.bf16 %v918
      %v951 = vunpack.c.l.bf16 %v919
      %v952 = vunpack.c.l.bf16 %v920
      %v953 = vunpack.c.l.bf16 %v921
      %v954 = vunpack.c.l.bf16 %v922
      %v955 = vunpack.c.l.bf16 %v923
      %v956 = vunpack.c.l.bf16 %v924
      %v957 = vunpack.c.l.bf16 %v925
      %v958 = vunpack.c.l.bf16 %v926
      %v959 = vunpack.c.l.bf16 %v927
      %v960 = vunpack.c.l.bf16 %v928
      %v961 = vunpack.c.l.bf16 %v929
      %v962 = vunpack.c.l.bf16 %v930
      %v963 = vunpack.c.l.bf16 %v931
      %v964 = vunpack.c.l.bf16 %v932
      %v965 = vunpack.c.l.bf16 %v933
      %v966 = vunpack.c.l.bf16 %v934
      %v967 = vunpack.c.l.bf16 %v935
      %v968 = vunpack.c.l.bf16 %v936
      %v969 = vunpack.c.l.bf16 %v937
      %v970 = vld [vmem:[%s238] sm:$0xff]
      %v971 = vld [vmem:[%s238 + $0x8] sm:$0xff]
      %v972 = vld [vmem:[%s238 + $0x10] sm:$0xff]
      %v973 = vld [vmem:[%s238 + $0x18] sm:$0xff]
      %v974 = vld [vmem:[%s238 + $0x20] sm:$0xff]
      %v975 = vld [vmem:[%s238 + $0x28] sm:$0xff]
      %v976 = vld [vmem:[%s238 + $0x30] sm:$0xff]
      %v977 = vld [vmem:[%s238 + $0x38] sm:$0xff]
      %v978 = vld [vmem:[%s238 + $0x40] sm:$0xff]
      %v979 = vld [vmem:[%s238 + $0x48] sm:$0xff]
      %v980 = vld [vmem:[%s238 + $0x50] sm:$0xff]
      %v981 = vld [vmem:[%s238 + $0x58] sm:$0xff]
      %v982 = vld [vmem:[%s238 + $0x60] sm:$0xff]
      %v983 = vld [vmem:[%s238 + $0x68] sm:$0xff]
      %v984 = vld [vmem:[%s238 + $0x70] sm:$0xff]
      %v985 = vld [vmem:[%s238 + $0x78] sm:$0xff]
      %v986 = vld [vmem:[%s238 + $0x80] sm:$0xff]
      %v987 = vld [vmem:[%s238 + $0x88] sm:$0xff]
      %v988 = vld [vmem:[%s238 + $0x90] sm:$0xff]
      %v989 = vld [vmem:[%s238 + $0x98] sm:$0xff]
      %v990 = vld [vmem:[%s238 + $0xa0] sm:$0xff]
      %v991 = vld [vmem:[%s238 + $0xa8] sm:$0xff]
      %v992 = vld [vmem:[%s238 + $0xb0] sm:$0xff]
      %v993 = vld [vmem:[%s238 + $0xb8] sm:$0xff]
      %v994 = vld [vmem:[%s238 + $0xc0] sm:$0xff]
      %v995 = vld [vmem:[%s238 + $0xc8] sm:$0xff]
      %v996 = vld [vmem:[%s238 + $0xd0] sm:$0xff]
      %v997 = vld [vmem:[%s238 + $0xd8] sm:$0xff]
      %v998 = vld [vmem:[%s238 + $0xe0] sm:$0xff]
      %v999 = vld [vmem:[%s238 + $0xe8] sm:$0xff]
      %v1000 = vld [vmem:[%s238 + $0xf0] sm:$0xff]
      %v1001 = vld [vmem:[%s238 + $0xf8] sm:$0xff]
      %1034 = vrot.lane.b32.xlu0 %v938, 24
      %v1035 = vpop.permute.xlu0 %1034
      %1036 = vrot.lane.b32.xlu0 %v939, 24
      %v1037 = vpop.permute.xlu0 %1036
      %1038 = vrot.lane.b32.xlu0 %v940, 24
      %v1039 = vpop.permute.xlu0 %1038
      %1040 = vrot.lane.b32.xlu0 %v941, 24
      %v1041 = vpop.permute.xlu0 %1040
      %1042 = vrot.lane.b32.xlu0 %v942, 24
      %v1043 = vpop.permute.xlu0 %1042
      %1044 = vrot.lane.b32.xlu0 %v943, 24
      %v1045 = vpop.permute.xlu0 %1044
      %1046 = vrot.lane.b32.xlu0 %v944, 24
      %v1047 = vpop.permute.xlu0 %1046
      %1048 = vrot.lane.b32.xlu0 %v945, 24
      %v1049 = vpop.permute.xlu0 %1048
      %1050 = vrot.lane.b32.xlu0 %v946, 24
      %v1051 = vpop.permute.xlu0 %1050
      %1052 = vrot.lane.b32.xlu0 %v947, 24
      %v1053 = vpop.permute.xlu0 %1052
      %1054 = vrot.lane.b32.xlu0 %v948, 24
      %v1055 = vpop.permute.xlu0 %1054
      %1056 = vrot.lane.b32.xlu0 %v949, 24
      %v1057 = vpop.permute.xlu0 %1056
      %1058 = vrot.lane.b32.xlu0 %v950, 24
      %v1059 = vpop.permute.xlu0 %1058
      %1060 = vrot.lane.b32.xlu0 %v951, 24
      %v1061 = vpop.permute.xlu0 %1060
      %1062 = vrot.lane.b32.xlu0 %v952, 24
      %v1063 = vpop.permute.xlu0 %1062
      %1064 = vrot.lane.b32.xlu0 %v953, 24
      %v1065 = vpop.permute.xlu0 %1064
      %1066 = vrot.lane.b32.xlu0 %v954, 24
      %v1067 = vpop.permute.xlu0 %1066
      %1068 = vrot.lane.b32.xlu0 %v955, 24
      %v1069 = vpop.permute.xlu0 %1068
      %1070 = vrot.lane.b32.xlu0 %v956, 24
      %v1071 = vpop.permute.xlu0 %1070
      %1072 = vrot.lane.b32.xlu0 %v957, 24
      %v1073 = vpop.permute.xlu0 %1072
      %1074 = vrot.lane.b32.xlu0 %v958, 24
      %v1075 = vpop.permute.xlu0 %1074
      %1076 = vrot.lane.b32.xlu0 %v959, 24
      %v1077 = vpop.permute.xlu0 %1076
      %1078 = vrot.lane.b32.xlu0 %v960, 24
      %v1079 = vpop.permute.xlu0 %1078
      %1080 = vrot.lane.b32.xlu0 %v961, 24
      %v1081 = vpop.permute.xlu0 %1080
      %1082 = vrot.lane.b32.xlu0 %v962, 24
      %v1083 = vpop.permute.xlu0 %1082
      %1084 = vrot.lane.b32.xlu0 %v963, 24
      %v1085 = vpop.permute.xlu0 %1084
      %1086 = vrot.lane.b32.xlu0 %v964, 24
      %v1087 = vpop.permute.xlu0 %1086
      %1088 = vrot.lane.b32.xlu0 %v965, 24
      %v1089 = vpop.permute.xlu0 %1088
      %1090 = vrot.lane.b32.xlu0 %v966, 24
      %v1091 = vpop.permute.xlu0 %1090
      %1092 = vrot.lane.b32.xlu0 %v967, 24
      %v1093 = vpop.permute.xlu0 %1092
      %1094 = vrot.lane.b32.xlu0 %v968, 24
      %v1095 = vpop.permute.xlu0 %1094
      %1096 = vrot.lane.b32.xlu0 %v969, 24
      %v1097 = vpop.permute.xlu0 %1096
      %1162 = vrot.lane.b32.xlu0 %v970, 24
      %v1163 = vpop.permute.xlu0 %1162
      %1164 = vrot.lane.b32.xlu0 %v971, 24
      %v1165 = vpop.permute.xlu0 %1164
      %1166 = vrot.lane.b32.xlu0 %v972, 24
      %v1167 = vpop.permute.xlu0 %1166
      %1168 = vrot.lane.b32.xlu0 %v973, 24
      %v1169 = vpop.permute.xlu0 %1168
      %1170 = vrot.lane.b32.xlu0 %v974, 24
      %v1171 = vpop.permute.xlu0 %1170
      %1172 = vrot.lane.b32.xlu0 %v975, 24
      %v1173 = vpop.permute.xlu0 %1172
      %1174 = vrot.lane.b32.xlu0 %v976, 24
      %v1175 = vpop.permute.xlu0 %1174
      %1176 = vrot.lane.b32.xlu0 %v977, 24
      %v1177 = vpop.permute.xlu0 %1176
      %1178 = vrot.lane.b32.xlu0 %v978, 24
      %v1179 = vpop.permute.xlu0 %1178
      %1180 = vrot.lane.b32.xlu0 %v979, 24
      %v1181 = vpop.permute.xlu0 %1180
      %1182 = vrot.lane.b32.xlu0 %v980, 24
      %v1183 = vpop.permute.xlu0 %1182
      %1184 = vrot.lane.b32.xlu0 %v981, 24
      %v1185 = vpop.permute.xlu0 %1184
      %1186 = vrot.lane.b32.xlu0 %v982, 24
      %v1187 = vpop.permute.xlu0 %1186
      %1188 = vrot.lane.b32.xlu0 %v983, 24
      %v1189 = vpop.permute.xlu0 %1188
      %1190 = vrot.lane.b32.xlu0 %v984, 24
      %v1191 = vpop.permute.xlu0 %1190
      %1192 = vrot.lane.b32.xlu0 %v985, 24
      %v1193 = vpop.permute.xlu0 %1192
      %1194 = vrot.lane.b32.xlu0 %v986, 24
      %v1195 = vpop.permute.xlu0 %1194
      %1196 = vrot.lane.b32.xlu0 %v987, 24
      %v1197 = vpop.permute.xlu0 %1196
      %1198 = vrot.lane.b32.xlu0 %v988, 24
      %v1199 = vpop.permute.xlu0 %1198
      %1200 = vrot.lane.b32.xlu0 %v989, 24
      %v1201 = vpop.permute.xlu0 %1200
      %1202 = vrot.lane.b32.xlu0 %v990, 24
      %v1203 = vpop.permute.xlu0 %1202
      %1204 = vrot.lane.b32.xlu0 %v991, 24
      %v1205 = vpop.permute.xlu0 %1204
      %1206 = vrot.lane.b32.xlu0 %v992, 24
      %v1207 = vpop.permute.xlu0 %1206
      %1208 = vrot.lane.b32.xlu0 %v993, 24
      %v1209 = vpop.permute.xlu0 %1208
      %1210 = vrot.lane.b32.xlu0 %v994, 24
      %v1211 = vpop.permute.xlu0 %1210
      %1212 = vrot.lane.b32.xlu0 %v995, 24
      %v1213 = vpop.permute.xlu0 %1212
      %1214 = vrot.lane.b32.xlu0 %v996, 24
      %v1215 = vpop.permute.xlu0 %1214
      %1216 = vrot.lane.b32.xlu0 %v997, 24
      %v1217 = vpop.permute.xlu0 %1216
      %1218 = vrot.lane.b32.xlu0 %v998, 24
      %v1219 = vpop.permute.xlu0 %1218
      %1220 = vrot.lane.b32.xlu0 %v999, 24
      %v1221 = vpop.permute.xlu0 %1220
      %1222 = vrot.lane.b32.xlu0 %v1000, 24
      %v1223 = vpop.permute.xlu0 %1222
      %1224 = vrot.lane.b32.xlu0 %v1001, 24
      %v1225 = vpop.permute.xlu0 %1224
      %vm1258 = vcmask 195584
      %v1259 = vsel %vm1258, %v874, %v1035
      %v1260 = vsel %vm1258, %v875, %v1037
      %v1261 = vsel %vm1258, %v876, %v1039
      %v1262 = vsel %vm1258, %v877, %v1041
      %v1263 = vsel %vm1258, %v878, %v1043
      %v1264 = vsel %vm1258, %v879, %v1045
      %v1265 = vsel %vm1258, %v880, %v1047
      %v1266 = vsel %vm1258, %v881, %v1049
      %v1267 = vsel %vm1258, %v882, %v1051
      %v1268 = vsel %vm1258, %v883, %v1053
      %v1269 = vsel %vm1258, %v884, %v1055
      %v1270 = vsel %vm1258, %v885, %v1057
      %v1271 = vsel %vm1258, %v886, %v1059
      %v1272 = vsel %vm1258, %v887, %v1061
      %v1273 = vsel %vm1258, %v888, %v1063
      %v1274 = vsel %vm1258, %v889, %v1065
      %v1275 = vsel %vm1258, %v890, %v1067
      %v1276 = vsel %vm1258, %v891, %v1069
      %v1277 = vsel %vm1258, %v892, %v1071
      %v1278 = vsel %vm1258, %v893, %v1073
      %v1279 = vsel %vm1258, %v894, %v1075
      %v1280 = vsel %vm1258, %v895, %v1077
      %v1281 = vsel %vm1258, %v896, %v1079
      %v1282 = vsel %vm1258, %v897, %v1081
      %v1283 = vsel %vm1258, %v898, %v1083
      %v1284 = vsel %vm1258, %v899, %v1085
      %v1285 = vsel %vm1258, %v900, %v1087
      %v1286 = vsel %vm1258, %v901, %v1089
      %v1287 = vsel %vm1258, %v902, %v1091
      %v1288 = vsel %vm1258, %v903, %v1093
      %v1289 = vsel %vm1258, %v904, %v1095
      %v1290 = vsel %vm1258, %v905, %v1097
      %v1291 = vsel %vm1258, %v1035, %v1163
      %v1292 = vsel %vm1258, %v1037, %v1165
      %v1293 = vsel %vm1258, %v1039, %v1167
      %v1294 = vsel %vm1258, %v1041, %v1169
      %v1295 = vsel %vm1258, %v1043, %v1171
      %v1296 = vsel %vm1258, %v1045, %v1173
      %v1297 = vsel %vm1258, %v1047, %v1175
      %v1298 = vsel %vm1258, %v1049, %v1177
      %v1299 = vsel %vm1258, %v1051, %v1179
      %v1300 = vsel %vm1258, %v1053, %v1181
      %v1301 = vsel %vm1258, %v1055, %v1183
      %v1302 = vsel %vm1258, %v1057, %v1185
      %v1303 = vsel %vm1258, %v1059, %v1187
      %v1304 = vsel %vm1258, %v1061, %v1189
      %v1305 = vsel %vm1258, %v1063, %v1191
      %v1306 = vsel %vm1258, %v1065, %v1193
      %v1307 = vsel %vm1258, %v1067, %v1195
      %v1308 = vsel %vm1258, %v1069, %v1197
      %v1309 = vsel %vm1258, %v1071, %v1199
      %v1310 = vsel %vm1258, %v1073, %v1201
      %v1311 = vsel %vm1258, %v1075, %v1203
      %v1312 = vsel %vm1258, %v1077, %v1205
      %v1313 = vsel %vm1258, %v1079, %v1207
      %v1314 = vsel %vm1258, %v1081, %v1209
      %v1315 = vsel %vm1258, %v1083, %v1211
      %v1316 = vsel %vm1258, %v1085, %v1213
      %v1317 = vsel %vm1258, %v1087, %v1215
      %v1318 = vsel %vm1258, %v1089, %v1217
      %v1319 = vsel %vm1258, %v1091, %v1219
      %v1320 = vsel %vm1258, %v1093, %v1221
      %v1321 = vsel %vm1258, %v1095, %v1223
      %v1322 = vsel %vm1258, %v1097, %v1225
      %1323 = vst [vmem:[%s245] sm:$0xff] %v1259
      %vm1324 = vcmask 203776
      %1325 = vst.msk [vmem:[%s245 + $0x8] sm:$0xff] %vm1324, %v1291
      %1326 = vst [vmem:[%s245 + $0x10] sm:$0xff] %v1260
      %1327 = vst.msk [vmem:[%s245 + $0x18] sm:$0xff] %vm1324, %v1292
      %1328 = vst [vmem:[%s245 + $0x20] sm:$0xff] %v1261
      %1329 = vst.msk [vmem:[%s245 + $0x28] sm:$0xff] %vm1324, %v1293
      %1330 = vst [vmem:[%s245 + $0x30] sm:$0xff] %v1262
      %1331 = vst.msk [vmem:[%s245 + $0x38] sm:$0xff] %vm1324, %v1294
      %1332 = vst [vmem:[%s245 + $0x40] sm:$0xff] %v1263
      %1333 = vst.msk [vmem:[%s245 + $0x48] sm:$0xff] %vm1324, %v1295
      %1334 = vst [vmem:[%s245 + $0x50] sm:$0xff] %v1264
      %1335 = vst.msk [vmem:[%s245 + $0x58] sm:$0xff] %vm1324, %v1296
      %1336 = vst [vmem:[%s245 + $0x60] sm:$0xff] %v1265
      %1337 = vst.msk [vmem:[%s245 + $0x68] sm:$0xff] %vm1324, %v1297
      %1338 = vst [vmem:[%s245 + $0x70] sm:$0xff] %v1266
      %1339 = vst.msk [vmem:[%s245 + $0x78] sm:$0xff] %vm1324, %v1298
      %1340 = vst [vmem:[%s245 + $0x80] sm:$0xff] %v1267
      %1341 = vst.msk [vmem:[%s245 + $0x88] sm:$0xff] %vm1324, %v1299
      %1342 = vst [vmem:[%s245 + $0x90] sm:$0xff] %v1268
      %1343 = vst.msk [vmem:[%s245 + $0x98] sm:$0xff] %vm1324, %v1300
      %1344 = vst [vmem:[%s245 + $0xa0] sm:$0xff] %v1269
      %1345 = vst.msk [vmem:[%s245 + $0xa8] sm:$0xff] %vm1324, %v1301
      %1346 = vst [vmem:[%s245 + $0xb0] sm:$0xff] %v1270
      %1347 = vst.msk [vmem:[%s245 + $0xb8] sm:$0xff] %vm1324, %v1302
      %1348 = vst [vmem:[%s245 + $0xc0] sm:$0xff] %v1271
      %1349 = vst.msk [vmem:[%s245 + $0xc8] sm:$0xff] %vm1324, %v1303
      %1350 = vst [vmem:[%s245 + $0xd0] sm:$0xff] %v1272
      %1351 = vst.msk [vmem:[%s245 + $0xd8] sm:$0xff] %vm1324, %v1304
      %1352 = vst [vmem:[%s245 + $0xe0] sm:$0xff] %v1273
      %1353 = vst.msk [vmem:[%s245 + $0xe8] sm:$0xff] %vm1324, %v1305
      %1354 = vst [vmem:[%s245 + $0xf0] sm:$0xff] %v1274
      %1355 = vst.msk [vmem:[%s245 + $0xf8] sm:$0xff] %vm1324, %v1306
      %1356 = vst [vmem:[%s245 + $0x100] sm:$0xff] %v1275
      %1357 = vst.msk [vmem:[%s245 + $0x108] sm:$0xff] %vm1324, %v1307
      %1358 = vst [vmem:[%s245 + $0x110] sm:$0xff] %v1276
      %1359 = vst.msk [vmem:[%s245 + $0x118] sm:$0xff] %vm1324, %v1308
      %1360 = vst [vmem:[%s245 + $0x120] sm:$0xff] %v1277
      %1361 = vst.msk [vmem:[%s245 + $0x128] sm:$0xff] %vm1324, %v1309
      %1362 = vst [vmem:[%s245 + $0x130] sm:$0xff] %v1278
      %1363 = vst.msk [vmem:[%s245 + $0x138] sm:$0xff] %vm1324, %v1310
      %1364 = vst [vmem:[%s245 + $0x140] sm:$0xff] %v1279
      %1365 = vst.msk [vmem:[%s245 + $0x148] sm:$0xff] %vm1324, %v1311
      %1366 = vst [vmem:[%s245 + $0x150] sm:$0xff] %v1280
      %1367 = vst.msk [vmem:[%s245 + $0x158] sm:$0xff] %vm1324, %v1312
      %1368 = vst [vmem:[%s245 + $0x160] sm:$0xff] %v1281
      %1369 = vst.msk [vmem:[%s245 + $0x168] sm:$0xff] %vm1324, %v1313
      %1370 = vst [vmem:[%s245 + $0x170] sm:$0xff] %v1282
      %1371 = vst.msk [vmem:[%s245 + $0x178] sm:$0xff] %vm1324, %v1314
      %1372 = vst [vmem:[%s245 + $0x180] sm:$0xff] %v1283
      %1373 = vst.msk [vmem:[%s245 + $0x188] sm:$0xff] %vm1324, %v1315
      %1374 = vst [vmem:[%s245 + $0x190] sm:$0xff] %v1284
      %1375 = vst.msk [vmem:[%s245 + $0x198] sm:$0xff] %vm1324, %v1316
      %1376 = vst [vmem:[%s245 + $0x1a0] sm:$0xff] %v1285
      %1377 = vst.msk [vmem:[%s245 + $0x1a8] sm:$0xff] %vm1324, %v1317
      %1378 = vst [vmem:[%s245 + $0x1b0] sm:$0xff] %v1286
      %1379 = vst.msk [vmem:[%s245 + $0x1b8] sm:$0xff] %vm1324, %v1318
      %1380 = vst [vmem:[%s245 + $0x1c0] sm:$0xff] %v1287
      %1381 = vst.msk [vmem:[%s245 + $0x1c8] sm:$0xff] %vm1324, %v1319
      %1382 = vst [vmem:[%s245 + $0x1d0] sm:$0xff] %v1288
      %1383 = vst.msk [vmem:[%s245 + $0x1d8] sm:$0xff] %vm1324, %v1320
      %1384 = vst [vmem:[%s245 + $0x1e0] sm:$0xff] %v1289
      %1385 = vst.msk [vmem:[%s245 + $0x1e8] sm:$0xff] %vm1324, %v1321
      %1386 = vst [vmem:[%s245 + $0x1f0] sm:$0xff] %v1290
      %1387 = vst.msk [vmem:[%s245 + $0x1f8] sm:$0xff] %vm1324, %v1322
      %s1388 = smul.u32 32, %s15
      %p1389 = scmp.lt.s32.totalorder %s1388, 63
      %s1390 = scalar_select %p1389, %s1388, 63
      %s1391 = smul.addr %s1390, 2
      %s1392 = smul.addr %s1391, 8
      %s1393 = scalar_lea.vmem %s4, %s1392
      // Predicated region
      $region37: #{tpu_custom_call.1} parent=35 // pred_check
        %p1394 = pneg %p132
      $region38: #{tpu_custom_call.1} parent=35 // pred_check_branch
        %1396 = sbr.rel (%p1394) target = $region40
      $region39: #{tpu_custom_call.1} parent=35 // pred_region
        %s1397 = smul.u32 32, %s15
      $region40: #{tpu_custom_call.1} parent=35 // pred_fallthru
        _
    $region36: #{tpu_custom_call.1} parent=5 // pred_fallthru
      _
    %p1398 = scmp.le.s32.totalorder 2, %s10
    // Predicated region
    $region41: #{tpu_custom_call.1} parent=5 // pred_check
      %p1399 = pneg %p1398
    $region42: #{tpu_custom_call.1} parent=5 // pred_check_branch
      %1401 = sbr.rel (%p1399) target = $region44
    $region43: #{tpu_custom_call.1} parent=5 // pred_region
      %s1402 = ssub.s32 %s10, 2
      // Predicated region
      $region45: #{tpu_custom_call.1} parent=43 // pred_check
        %p1403 = pneg %p138
      $region46: #{tpu_custom_call.1} parent=43 // pred_check_branch
        %1405 = sbr.rel (%p1403) target = $region48
      $region47: #{tpu_custom_call.1} parent=43 // pred_region
        %s1406 = smul.u32 32, %s16
        %p1407 = scmp.lt.s32.totalorder %s1406, 63
        %s1408 = scalar_select %p1407, %s1406, 63
        %s1409 = smul.addr %s1408, 2
        %s1410 = smul.addr %s1409, 8
        %s1411 = scalar_lea.vmem %s4, %s1410
      $region48: #{tpu_custom_call.1} parent=43 // pred_fallthru
        _
    $region44: #{tpu_custom_call.1} parent=5 // pred_fallthru
      _
  $region6: #{tpu_custom_call.1} parent=0 // loop_footer
    %s14 = sadd.s32 1, %s10
  $region7: #{tpu_custom_call.1} parent=0 // loop_footer_branch
    %9 = sbr.rel target = $region3
  $region8: #{tpu_custom_call.1} parent=0 // loop_exit
    _

</llo_original>
